<compile_context>
chip_gen: v7x
topology: tpu7x:2x2x1
jax: 0.10.0
libtpu: 0.0.40
codegen_flags: <defaults>
</compile_context>

<pallas_src>
import functools

import jax
import jax.numpy as jnp
from jax.experimental import pallas as pl
from jax.experimental.pallas import tpu as pltpu

_LANES = 128
_MAX_TILE_ROWS = 1024          # 1024 x 128 x 4 B = 512 KiB per f32 input block
_MAX_PARALLEL_CHUNKS = 8       # outer "parallel" grid axis (megacore on v7x)


def _round_up(x, m):
    return ((x + m - 1) // m) * m


def _fused_sse_kernel(xp_ref, yp_ref, xv_ref, yv_ref,
                      out_pos_ref, out_vel_ref,
                      acc_pos_ref, acc_vel_ref,
                      *, n_inner, tile_rows, rows_pos, rows_vel):
    """Per-chunk sum((x-y)^2) for the pos pair and the vel pair.

    Grid = (n_par, n_inner): axis 0 is a parallel chunk axis (each chunk owns
    one (8, 128) partial-sum tile per output), axis 1 is the reduction axis.
    """
    j = pl.program_id(0)           # parallel chunk
    k = pl.program_id(1)           # reduction step inside the chunk
    blk = j * n_inner + k          # global row-block index (unclamped)

    @pl.when(k == 0)
    def _():
        acc_pos_ref[...] = jnp.zeros_like(acc_pos_ref)
        acc_vel_ref[...] = jnp.zeros_like(acc_vel_ref)

    # Row-validity masks: rows beyond each tensor's true row count are either
    # ragged-DMA garbage or re-reads of a clamped block -> force them to 0.
    row_ids = blk * tile_rows + jax.lax.broadcasted_iota(
        jnp.int32, (tile_rows, _LANES), 0)
    pos_mask = row_ids < rows_pos
    vel_mask = row_ids < rows_vel

    # Pure-VPU per-step work: elementwise diff/square/accumulate.
    dp = xp_ref[...].astype(jnp.float32) - yp_ref[...].astype(jnp.float32)
    dv = xv_ref[...].astype(jnp.float32) - yv_ref[...].astype(jnp.float32)
    acc_pos_ref[...] += jnp.where(pos_mask, dp * dp, 0.0)
    acc_vel_ref[...] += jnp.where(vel_mask, dv * dv, 0.0)

    # Cross-row reduce only once per chunk, on the last reduction step.
    @pl.when(k == n_inner - 1)
    def _():
        out_pos_ref[...] = jnp.sum(
            acc_pos_ref[...].reshape(tile_rows // 8, 8, _LANES), axis=0)
        out_vel_ref[...] = jnp.sum(
            acc_vel_ref[...].reshape(tile_rows // 8, 8, _LANES), axis=0)


def _as_rows(x):
    """Flatten to (rows, 128).

    Only a small lane-tail pad (< 128 zeros) is added when the flattened size
    is not a multiple of 128; zeros contribute 0 to the SSE.  The row
    direction is never padded — ragged row blocks are masked in the kernel.
    """
    n = x.size
    flat = jnp.ravel(x)
    rem = n % _LANES
    if rem:
        flat = jnp.pad(flat, (0, _LANES - rem))
    return flat.reshape(-1, _LANES)


def combination_loss(pred_pos, true_pos, pred_vel, true_vel,
                     alpha=0.75, beta=0.25):
    assert pred_pos.shape == true_pos.shape, (pred_pos.shape, true_pos.shape)
    assert pred_vel.shape == true_vel.shape, (pred_vel.shape, true_vel.shape)
    n_pos = pred_pos.size
    n_vel = pred_vel.size

    xp, yp = _as_rows(pred_pos), _as_rows(true_pos)
    xv, yv = _as_rows(pred_vel), _as_rows(true_vel)
    rows_pos = xp.shape[0]
    rows_vel = xv.shape[0]
    rows_max = max(rows_pos, rows_vel)

    # Tile sizing: as large as useful, capped so the double-buffered pipeline
    # fits default scoped VMEM on every TPU generation; multiple of 16 rows.
    tile_rows = min(_MAX_TILE_ROWS, _round_up(rows_max, 16))
    total_blocks = pl.cdiv(rows_max, tile_rows)
    n_par = min(_MAX_PARALLEL_CHUNKS, total_blocks)
    n_inner = pl.cdiv(total_blocks, n_par)

    nblk_pos = pl.cdiv(rows_pos, tile_rows)
    nblk_vel = pl.cdiv(rows_vel, tile_rows)

    def _in_map(nblk):
        last = nblk - 1

        def index_map(j, k):
            # Clamp so a chunk that runs past this tensor's extent re-reads
            # the last block (its contribution is fully masked in-kernel).
            return (jnp.minimum(j * n_inner + k, last), 0)

        return index_map

    def _out_map(j, k):
        return (j, 0)

    kernel = functools.partial(
        _fused_sse_kernel,
        n_inner=n_inner, tile_rows=tile_rows,
        rows_pos=rows_pos, rows_vel=rows_vel)

    out_pos, out_vel = pl.pallas_call(
        kernel,
        out_shape=(
            jax.ShapeDtypeStruct((n_par * 8, _LANES), jnp.float32),
            jax.ShapeDtypeStruct((n_par * 8, _LANES), jnp.float32),
        ),
        grid_spec=pltpu.PrefetchScalarGridSpec(
            num_scalar_prefetch=0,
            grid=(n_par, n_inner),
            in_specs=[
                pl.BlockSpec((tile_rows, _LANES), _in_map(nblk_pos)),
                pl.BlockSpec((tile_rows, _LANES), _in_map(nblk_pos)),
                pl.BlockSpec((tile_rows, _LANES), _in_map(nblk_vel)),
                pl.BlockSpec((tile_rows, _LANES), _in_map(nblk_vel)),
            ],
            out_specs=[
                pl.BlockSpec((8, _LANES), _out_map),
                pl.BlockSpec((8, _LANES), _out_map),
            ],
            scratch_shapes=[
                pltpu.VMEM((tile_rows, _LANES), jnp.float32),
                pltpu.VMEM((tile_rows, _LANES), jnp.float32),
            ],
        ),
        compiler_params=pltpu.CompilerParams(
            dimension_semantics=("parallel", "arbitrary"),
            vmem_limit_bytes=32 * 1024 * 1024,
        ),
    )(xp, yp, xv, yv)

    # Tiny (n_par*8, 128) partial-sum tiles -> final scalar reduction in JAX,
    # dividing by the *unpadded* element counts.
    mse_pos = jnp.sum(out_pos) / jnp.float32(n_pos)
    mse_vel = jnp.sum(out_vel) / jnp.float32(n_vel)
    return jnp.float32(alpha) * mse_pos + jnp.float32(beta) * mse_vel


def _reference(pred_pos, true_pos, pred_vel, true_vel, alpha=0.75, beta=0.25):
    return (alpha * jnp.mean((pred_pos - true_pos) ** 2)
            + beta * jnp.mean((pred_vel - true_vel) ** 2))


if __name__ == "__main__":
    key = jax.random.PRNGKey(0)
    loss_fn = jax.jit(combination_loss)

    # Check 1: small viewport-trajectory shapes implied by the module:
    # [batch, seq, 3] positions and velocities.
    k1, k2, k3, k4, key = jax.random.split(key, 5)
    B, S, D = 2, 8, 3
    pred_pos = jax.random.normal(k1, (B, S, D), dtype=jnp.float32)
    true_pos = jax.random.normal(k2, (B, S, D), dtype=jnp.float32)
    pred_vel = jax.random.normal(k3, (B, S, D), dtype=jnp.float32)
    true_vel = jax.random.normal(k4, (B, S, D), dtype=jnp.float32)

    loss = jax.block_until_ready(loss_fn(pred_pos, true_pos, pred_vel, true_vel))
    ref = _reference(pred_pos, true_pos, pred_vel, true_vel)
    assert jnp.allclose(loss, ref, rtol=1e-5, atol=1e-6), (loss, ref)

    # Check 2: larger, unequal pos/vel sizes to exercise multi-block grid,
    # the parallel chunk axis, in-kernel tail masking and index clamping.
    k1, k2, k3, k4, key = jax.random.split(key, 5)
    pred_pos2 = jax.random.normal(k1, (64, 1024, 3), dtype=jnp.float32)
    true_pos2 = jax.random.normal(k2, (64, 1024, 3), dtype=jnp.float32)
    pred_vel2 = jax.random.normal(k3, (48, 700, 3), dtype=jnp.float32)
    true_vel2 = jax.random.normal(k4, (48, 700, 3), dtype=jnp.float32)

    loss2 = jax.block_until_ready(
        combination_loss(pred_pos2, true_pos2, pred_vel2, true_vel2))
    ref2 = _reference(pred_pos2, true_pos2, pred_vel2, true_vel2)
    assert jnp.allclose(loss2, ref2, rtol=1e-5, atol=1e-6), (loss2, ref2)

    print("KERNEL_OK")
</pallas_src>

<mosaic_0001>
module attributes {stable_mosaic.version = 11 : i64} {
  func.func @_fused_sse_kernel(%arg0: i32, %arg1: i32, %arg2: memref<16x128xf32, #tpu.memory_space<vmem>>, %arg3: memref<16x128xf32, #tpu.memory_space<vmem>>, %arg4: memref<16x128xf32, #tpu.memory_space<vmem>>, %arg5: memref<16x128xf32, #tpu.memory_space<vmem>>, %arg6: memref<8x128xf32, #tpu.memory_space<vmem>>, %arg7: memref<8x128xf32, #tpu.memory_space<vmem>>, %arg8: memref<16x128xf32, #tpu.memory_space<vmem>>, %arg9: memref<16x128xf32, #tpu.memory_space<vmem>>) attributes {dimension_semantics = [#tpu.dimension_semantics<parallel>, #tpu.dimension_semantics<arbitrary>], iteration_bounds = array<i64: 1, 1>, scalar_prefetch = 0 : i64, scratch_operands = 2 : i64, tpu.core_type = #tpu.core_type<tc>, window_params = [{transform_indices = @transform_0, window_bounds = array<i64: 16, 128>}, {transform_indices = @transform_1, window_bounds = array<i64: 16, 128>}, {transform_indices = @transform_2, window_bounds = array<i64: 16, 128>}, {transform_indices = @transform_3, window_bounds = array<i64: 16, 128>}, {transform_indices = @transform_4, window_bounds = array<i64: 8, 128>}, {transform_indices = @transform_5, window_bounds = array<i64: 8, 128>}]} {
    %c1_i32 = arith.constant 1 : i32
    %0 = arith.muli %arg0, %c1_i32 : i32
    %1 = arith.addi %0, %arg1 : i32
    %c0_i32 = arith.constant 0 : i32
    %2 = arith.cmpi eq, %arg1, %c0_i32 : i32
    %3 = arith.extui %2 : i1 to i32
    %c0_i32_0 = arith.constant 0 : i32
    %4 = arith.cmpi ne, %3, %c0_i32_0 : i32
    scf.if %4 {
      %cst_21 = arith.constant 0.000000e+00 : f32
      %34 = vector.broadcast %cst_21 : f32 to vector<16x128xf32>
      %c0_22 = arith.constant 0 : index
      %c0_23 = arith.constant 0 : index
      %35 = vector.load %arg8[%c0_22, %c0_23] : memref<16x128xf32, #tpu.memory_space<vmem>>, vector<16x128xf32>
      tpu.vector_store %arg8[%c0_22, %c0_23], %34 {strides = array<i32>} : memref<16x128xf32, #tpu.memory_space<vmem>>, vector<16x128xf32>,
      %cst_24 = arith.constant 0.000000e+00 : f32
      %36 = vector.broadcast %cst_24 : f32 to vector<16x128xf32>
      %c0_25 = arith.constant 0 : index
      %c0_26 = arith.constant 0 : index
      %37 = vector.load %arg9[%c0_25, %c0_26] : memref<16x128xf32, #tpu.memory_space<vmem>>, vector<16x128xf32>
      tpu.vector_store %arg9[%c0_25, %c0_26], %36 {strides = array<i32>} : memref<16x128xf32, #tpu.memory_space<vmem>>, vector<16x128xf32>,
    } else {
    }
    %c16_i32 = arith.constant 16 : i32
    %5 = arith.muli %1, %c16_i32 : i32
    %6 = tpu.iota {dimensions = array<i32: 0>} : vector<16x128xi32>
    %7 = vector.broadcast %5 : i32 to vector<16x128xi32>
    %8 = arith.addi %7, %6 : vector<16x128xi32>
    %c1_i32_1 = arith.constant 1 : i32
    %9 = vector.broadcast %c1_i32_1 : i32 to vector<16x128xi32>
    %10 = arith.cmpi slt, %8, %9 : vector<16x128xi32>
    %c1_i32_2 = arith.constant 1 : i32
    %11 = vector.broadcast %c1_i32_2 : i32 to vector<16x128xi32>
    %12 = arith.cmpi slt, %8, %11 : vector<16x128xi32>
    %c0 = arith.constant 0 : index
    %c0_3 = arith.constant 0 : index
    %13 = vector.load %arg2[%c0, %c0_3] : memref<16x128xf32, #tpu.memory_space<vmem>>, vector<16x128xf32>
    %c0_4 = arith.constant 0 : index
    %c0_5 = arith.constant 0 : index
    %14 = vector.load %arg3[%c0_4, %c0_5] : memref<16x128xf32, #tpu.memory_space<vmem>>, vector<16x128xf32>
    %15 = arith.subf %13, %14 : vector<16x128xf32>
    %c0_6 = arith.constant 0 : index
    %c0_7 = arith.constant 0 : index
    %16 = vector.load %arg4[%c0_6, %c0_7] : memref<16x128xf32, #tpu.memory_space<vmem>>, vector<16x128xf32>
    %c0_8 = arith.constant 0 : index
    %c0_9 = arith.constant 0 : index
    %17 = vector.load %arg5[%c0_8, %c0_9] : memref<16x128xf32, #tpu.memory_space<vmem>>, vector<16x128xf32>
    %18 = arith.subf %16, %17 : vector<16x128xf32>
    %c0_10 = arith.constant 0 : index
    %c0_11 = arith.constant 0 : index
    %19 = vector.load %arg8[%c0_10, %c0_11] : memref<16x128xf32, #tpu.memory_space<vmem>>, vector<16x128xf32>
    %20 = arith.mulf %15, %15 : vector<16x128xf32>
    %cst = arith.constant 0.000000e+00 : f32
    %21 = vector.broadcast %cst : f32 to vector<16x128xf32>
    %22 = arith.select %10, %20, %21 : vector<16x128xi1>, vector<16x128xf32>
    %23 = arith.addf %19, %22 : vector<16x128xf32>
    %c0_12 = arith.constant 0 : index
    %c0_13 = arith.constant 0 : index
    %24 = vector.load %arg8[%c0_12, %c0_13] : memref<16x128xf32, #tpu.memory_space<vmem>>, vector<16x128xf32>
    tpu.vector_store %arg8[%c0_12, %c0_13], %23 {strides = array<i32>} : memref<16x128xf32, #tpu.memory_space<vmem>>, vector<16x128xf32>,
    %c0_14 = arith.constant 0 : index
    %c0_15 = arith.constant 0 : index
    %25 = vector.load %arg9[%c0_14, %c0_15] : memref<16x128xf32, #tpu.memory_space<vmem>>, vector<16x128xf32>
    %26 = arith.mulf %18, %18 : vector<16x128xf32>
    %cst_16 = arith.constant 0.000000e+00 : f32
    %27 = vector.broadcast %cst_16 : f32 to vector<16x128xf32>
    %28 = arith.select %12, %26, %27 : vector<16x128xi1>, vector<16x128xf32>
    %29 = arith.addf %25, %28 : vector<16x128xf32>
    %c0_17 = arith.constant 0 : index
    %c0_18 = arith.constant 0 : index
    %30 = vector.load %arg9[%c0_17, %c0_18] : memref<16x128xf32, #tpu.memory_space<vmem>>, vector<16x128xf32>
    tpu.vector_store %arg9[%c0_17, %c0_18], %29 {strides = array<i32>} : memref<16x128xf32, #tpu.memory_space<vmem>>, vector<16x128xf32>,
    %c0_i32_19 = arith.constant 0 : i32
    %31 = arith.cmpi eq, %arg1, %c0_i32_19 : i32
    %32 = arith.extui %31 : i1 to i32
    %c0_i32_20 = arith.constant 0 : i32
    %33 = arith.cmpi ne, %32, %c0_i32_20 : i32
    scf.if %33 {
      %c0_21 = arith.constant 0 : index
      %c0_22 = arith.constant 0 : index
      %34 = vector.load %arg8[%c0_21, %c0_22] : memref<16x128xf32, #tpu.memory_space<vmem>>, vector<16x128xf32>
      %35 = vector.shape_cast %34 : vector<16x128xf32> to vector<2x8x128xf32>
      %cst_23 = arith.constant dense<0.000000e+00> : vector<8x128xf32>
      %36 = vector.multi_reduction <add>, %35, %cst_23 [0] : vector<2x8x128xf32> to vector<8x128xf32>
      %c0_24 = arith.constant 0 : index
      %c0_25 = arith.constant 0 : index
      %37 = vector.load %arg6[%c0_24, %c0_25] : memref<8x128xf32, #tpu.memory_space<vmem>>, vector<8x128xf32>
      tpu.vector_store %arg6[%c0_24, %c0_25], %36 {strides = array<i32>} : memref<8x128xf32, #tpu.memory_space<vmem>>, vector<8x128xf32>,
      %c0_26 = arith.constant 0 : index
      %c0_27 = arith.constant 0 : index
      %38 = vector.load %arg9[%c0_26, %c0_27] : memref<16x128xf32, #tpu.memory_space<vmem>>, vector<16x128xf32>
      %39 = vector.shape_cast %38 : vector<16x128xf32> to vector<2x8x128xf32>
      %cst_28 = arith.constant dense<0.000000e+00> : vector<8x128xf32>
      %40 = vector.multi_reduction <add>, %39, %cst_28 [0] : vector<2x8x128xf32> to vector<8x128xf32>
      %c0_29 = arith.constant 0 : index
      %c0_30 = arith.constant 0 : index
      %41 = vector.load %arg7[%c0_29, %c0_30] : memref<8x128xf32, #tpu.memory_space<vmem>>, vector<8x128xf32>
      tpu.vector_store %arg7[%c0_29, %c0_30], %40 {strides = array<i32>} : memref<8x128xf32, #tpu.memory_space<vmem>>, vector<8x128xf32>,
    } else {
    }
    return
  }
  func.func @transform_0(%arg0: i32, %arg1: i32) -> (i32, i32) {
    %c1_i32 = arith.constant 1 : i32
    %0 = arith.muli %arg0, %c1_i32 : i32
    %1 = arith.addi %0, %arg1 : i32
    %c0_i32 = arith.constant 0 : i32
    %2 = arith.minsi %1, %c0_i32 : i32
    %c0_i32_0 = arith.constant 0 : i32
    %c0_i32_1 = arith.constant 0 : i32
    return %2, %c0_i32_0 : i32, i32
  }
  func.func @transform_1(%arg0: i32, %arg1: i32) -> (i32, i32) {
    %c1_i32 = arith.constant 1 : i32
    %0 = arith.muli %arg0, %c1_i32 : i32
    %1 = arith.addi %0, %arg1 : i32
    %c0_i32 = arith.constant 0 : i32
    %2 = arith.minsi %1, %c0_i32 : i32
    %c0_i32_0 = arith.constant 0 : i32
    %c0_i32_1 = arith.constant 0 : i32
    return %2, %c0_i32_0 : i32, i32
  }
  func.func @transform_2(%arg0: i32, %arg1: i32) -> (i32, i32) {
    %c1_i32 = arith.constant 1 : i32
    %0 = arith.muli %arg0, %c1_i32 : i32
    %1 = arith.addi %0, %arg1 : i32
    %c0_i32 = arith.constant 0 : i32
    %2 = arith.minsi %1, %c0_i32 : i32
    %c0_i32_0 = arith.constant 0 : i32
    %c0_i32_1 = arith.constant 0 : i32
    return %2, %c0_i32_0 : i32, i32
  }
  func.func @transform_3(%arg0: i32, %arg1: i32) -> (i32, i32) {
    %c1_i32 = arith.constant 1 : i32
    %0 = arith.muli %arg0, %c1_i32 : i32
    %1 = arith.addi %0, %arg1 : i32
    %c0_i32 = arith.constant 0 : i32
    %2 = arith.minsi %1, %c0_i32 : i32
    %c0_i32_0 = arith.constant 0 : i32
    %c0_i32_1 = arith.constant 0 : i32
    return %2, %c0_i32_0 : i32, i32
  }
  func.func @transform_4(%arg0: i32, %arg1: i32) -> (i32, i32) {
    %c0_i32 = arith.constant 0 : i32
    %c0_i32_0 = arith.constant 0 : i32
    return %arg0, %c0_i32 : i32, i32
  }
  func.func @transform_5(%arg0: i32, %arg1: i32) -> (i32, i32) {
    %c0_i32 = arith.constant 0 : i32
    %c0_i32_0 = arith.constant 0 : i32
    return %arg0, %c0_i32 : i32, i32
  }
}

</mosaic_0001>

<llo_original>
// kernel: combination_loss.1
$region0: #{combination_loss.1}
  #allocation0 [shape = 'u32[]', space=smem, size = 0x4, offset = 0x4, fixed_abs, tag = 'smem constant byte address 0x4 - core index']
  #allocation1 [shape = 'u32[144,128]{1,0:T(1,128)}', space=vmem, size = 0x12000, scoped, tag = 'internal scratch']
  #allocation2 [shape = 'f32[16,128]{1,0:T(8,128)}', space=vmem, size = 0x2000, scoped, tag = 'scratch operand']
  #allocation3 [shape = 'f32[16,128]{1,0:T(8,128)}', space=vmem, size = 0x2000, scoped, tag = 'scratch operand']
  %s0 = inlined_call_operand.vmem [shape: f32[1,128], index: 0, kind: input, shape index: {}]
  %s1 = inlined_call_operand.vmem [shape: f32[1,128], index: 1, kind: input, shape index: {}]
  %s2 = inlined_call_operand.vmem [shape: f32[1,128], index: 2, kind: input, shape index: {}]
  %s3 = inlined_call_operand.vmem [shape: f32[1,128], index: 3, kind: input, shape index: {}]
  %s4 = inlined_call_operand.vmem [shape: f32[8,128], index: 4, kind: output, shape index: {0}]
  %s5 = inlined_call_operand.vmem [shape: f32[8,128], index: 5, kind: output, shape index: {1}]
  %6 = xla_tuple %s4, %s5
  %s7 = sld [smem:[#allocation0]]
  $region42: #{combination_loss.1} parent=0
    _
  %s9 = ssub.s32 1, %s7
  %s10 = scalar_select 0, %s9, %s7
  // Predicated region
  $region2: #{combination_loss.1} parent=0 // pred_check
    _
  $region3: #{combination_loss.1} parent=0 // pred_check_branch
    %12 = sbr.rel (0) target = $region5
  $region4: #{combination_loss.1} parent=0 // pred_region
    %s13 = sadd.s32 0, 0
    %p14 = scmp.lt.s32.totalorder %s13, 0
    %s15 = scalar_select %p14, %s13, 0
    %s16 = smul.u32 16, %s15
    %s17 = ssub.s32 1, %s16
    %s18 = smul.u32 16, %s17
    %p19 = scmp.lt.s32.totalorder %s16, 0
    %s20 = scalar_select %p19, %s16, 0
    %s21 = scalar_lea.vmem %s0, %s20
    %s22 = sadd.s32 0, 0
    %p23 = scmp.lt.s32.totalorder %s22, 0
    %s24 = scalar_select %p23, %s22, 0
    %s25 = smul.u32 16, %s24
    %s26 = ssub.s32 1, %s25
    %s27 = smul.u32 16, %s26
  $region5: #{combination_loss.1} parent=0 // pred_fallthru
    _
  // Predicated region
  $region6: #{combination_loss.1} parent=0 // pred_check
    _
  $region7: #{combination_loss.1} parent=0 // pred_check_branch
    %29 = sbr.rel (0) target = $region9
  $region8: #{combination_loss.1} parent=0 // pred_region
    %s30 = sadd.s32 0, 0
    %p31 = scmp.lt.s32.totalorder %s30, 0
    %s32 = scalar_select %p31, %s30, 0
    %s33 = smul.u32 16, %s32
    %s34 = ssub.s32 1, %s33
    %s35 = smul.u32 16, %s34
    %p36 = scmp.lt.s32.totalorder %s33, 0
    %s37 = scalar_select %p36, %s33, 0
    %s38 = scalar_lea.vmem %s1, %s37
    %s39 = sadd.s32 0, 0
    %p40 = scmp.lt.s32.totalorder %s39, 0
    %s41 = scalar_select %p40, %s39, 0
    %s42 = smul.u32 16, %s41
    %s43 = ssub.s32 1, %s42
    %s44 = smul.u32 16, %s43
  $region9: #{combination_loss.1} parent=0 // pred_fallthru
    _
  // Predicated region
  $region10: #{combination_loss.1} parent=0 // pred_check
    _
  $region11: #{combination_loss.1} parent=0 // pred_check_branch
    %46 = sbr.rel (0) target = $region13
  $region12: #{combination_loss.1} parent=0 // pred_region
    %s47 = sadd.s32 0, 0
    %p48 = scmp.lt.s32.totalorder %s47, 0
    %s49 = scalar_select %p48, %s47, 0
    %s50 = smul.u32 16, %s49
    %s51 = ssub.s32 1, %s50
    %s52 = smul.u32 16, %s51
    %p53 = scmp.lt.s32.totalorder %s50, 0
    %s54 = scalar_select %p53, %s50, 0
    %s55 = scalar_lea.vmem %s2, %s54
    %s56 = sadd.s32 0, 0
    %p57 = scmp.lt.s32.totalorder %s56, 0
    %s58 = scalar_select %p57, %s56, 0
    %s59 = smul.u32 16, %s58
    %s60 = ssub.s32 1, %s59
    %s61 = smul.u32 16, %s60
  $region13: #{combination_loss.1} parent=0 // pred_fallthru
    _
  // Predicated region
  $region14: #{combination_loss.1} parent=0 // pred_check
    _
  $region15: #{combination_loss.1} parent=0 // pred_check_branch
    %63 = sbr.rel (0) target = $region17
  $region16: #{combination_loss.1} parent=0 // pred_region
    %s64 = sadd.s32 0, 0
    %p65 = scmp.lt.s32.totalorder %s64, 0
    %s66 = scalar_select %p65, %s64, 0
    %s67 = smul.u32 16, %s66
    %s68 = ssub.s32 1, %s67
    %s69 = smul.u32 16, %s68
    %p70 = scmp.lt.s32.totalorder %s67, 0
    %s71 = scalar_select %p70, %s67, 0
    %s72 = scalar_lea.vmem %s3, %s71
    %s73 = sadd.s32 0, 0
    %p74 = scmp.lt.s32.totalorder %s73, 0
    %s75 = scalar_select %p74, %s73, 0
    %s76 = smul.u32 16, %s75
    %s77 = ssub.s32 1, %s76
    %s78 = smul.u32 16, %s77
  $region17: #{combination_loss.1} parent=0 // pred_fallthru
    _
  %s79 = sadd.s32 0, 0
  %p80 = scmp.lt.s32.totalorder %s79, 0
  %s81 = scalar_select %p80, %s79, 0
  %s82 = smul.u32 16, %s81
  %s83 = ssub.s32 1, %s82
  %s84 = smul.u32 16, %s83
  %p85 = scmp.lt.s32.totalorder %s82, 0
  %s86 = scalar_select %p85, %s82, 0
  %s87 = scalar_lea.vmem %s0, %s86
  %s88 = sadd.s32 0, 0
  %p89 = scmp.lt.s32.totalorder %s88, 0
  %s90 = scalar_select %p89, %s88, 0
  %s91 = smul.u32 16, %s90
  %s92 = ssub.s32 1, %s91
  %s93 = smul.u32 16, %s92
  %p94 = scmp.lt.s32.totalorder %s91, 0
  %s95 = scalar_select %p94, %s91, 0
  %s96 = scalar_lea.vmem %s1, %s95
  %s97 = sadd.s32 0, 0
  %p98 = scmp.lt.s32.totalorder %s97, 0
  %s99 = scalar_select %p98, %s97, 0
  %s100 = smul.u32 16, %s99
  %s101 = ssub.s32 1, %s100
  %s102 = smul.u32 16, %s101
  %p103 = scmp.lt.s32.totalorder %s100, 0
  %s104 = scalar_select %p103, %s100, 0
  %s105 = scalar_lea.vmem %s2, %s104
  %s106 = sadd.s32 0, 0
  %p107 = scmp.lt.s32.totalorder %s106, 0
  %s108 = scalar_select %p107, %s106, 0
  %s109 = smul.u32 16, %s108
  %s110 = ssub.s32 1, %s109
  %s111 = smul.u32 16, %s110
  %p112 = scmp.lt.s32.totalorder %s109, 0
  %s113 = scalar_select %p112, %s109, 0
  %s114 = scalar_lea.vmem %s3, %s113
  %s115 = sadd.s32 0, 0
  %p116 = scmp.lt.s32.totalorder %s115, 0
  %s117 = scalar_select %p116, %s115, 0
  %s118 = smul.u32 16, %s117
  %s119 = ssub.s32 1, %s118
  %s120 = smul.u32 16, %s119
  %p121 = scmp.lt.s32.totalorder %s118, 0
  %s122 = scalar_select %p121, %s118, 0
  %s123 = scalar_lea.vmem %s0, %s122
  %s124 = sadd.s32 0, 0
  %p125 = scmp.lt.s32.totalorder %s124, 0
  %s126 = scalar_select %p125, %s124, 0
  %s127 = smul.u32 16, %s126
  %s128 = ssub.s32 1, %s127
  %s129 = smul.u32 16, %s128
  %s130 = sadd.s32 0, 0
  %p131 = scmp.lt.s32.totalorder %s130, 0
  %s132 = scalar_select %p131, %s130, 0
  %s133 = smul.u32 16, %s132
  %s134 = ssub.s32 1, %s133
  %s135 = smul.u32 16, %s134
  %p136 = scmp.lt.s32.totalorder %s133, 0
  %s137 = scalar_select %p136, %s133, 0
  %s138 = scalar_lea.vmem %s1, %s137
  %s139 = sadd.s32 0, 0
  %p140 = scmp.lt.s32.totalorder %s139, 0
  %s141 = scalar_select %p140, %s139, 0
  %s142 = smul.u32 16, %s141
  %s143 = ssub.s32 1, %s142
  %s144 = smul.u32 16, %s143
  %s145 = sadd.s32 0, 0
  %p146 = scmp.lt.s32.totalorder %s145, 0
  %s147 = scalar_select %p146, %s145, 0
  %s148 = smul.u32 16, %s147
  %s149 = ssub.s32 1, %s148
  %s150 = smul.u32 16, %s149
  %p151 = scmp.lt.s32.totalorder %s148, 0
  %s152 = scalar_select %p151, %s148, 0
  %s153 = scalar_lea.vmem %s2, %s152
  %s154 = sadd.s32 0, 0
  %p155 = scmp.lt.s32.totalorder %s154, 0
  %s156 = scalar_select %p155, %s154, 0
  %s157 = smul.u32 16, %s156
  %s158 = ssub.s32 1, %s157
  %s159 = smul.u32 16, %s158
  %s160 = sadd.s32 0, 0
  %p161 = scmp.lt.s32.totalorder %s160, 0
  %s162 = scalar_select %p161, %s160, 0
  %s163 = smul.u32 16, %s162
  %s164 = ssub.s32 1, %s163
  %s165 = smul.u32 16, %s164
  %p166 = scmp.lt.s32.totalorder %s163, 0
  %s167 = scalar_select %p166, %s163, 0
  %s168 = scalar_lea.vmem %s3, %s167
  %s169 = sadd.s32 0, 0
  %p170 = scmp.lt.s32.totalorder %s169, 0
  %s171 = scalar_select %p170, %s169, 0
  %s172 = smul.u32 16, %s171
  %s173 = ssub.s32 1, %s172
  %s174 = smul.u32 16, %s173
  %s175 = sadd.s32 0, 0
  %p176 = scmp.eq.s32.totalorder 0, 0
  // Predicated region
  $region18: #{combination_loss.1} parent=0 // pred_check
    %p177 = pneg %p176
  $region19: #{combination_loss.1} parent=0 // pred_check_branch
    %179 = sbr.rel (%p177) target = $region21
  $region20: #{combination_loss.1} parent=0 // pred_region
    %180 = vst [vmem:[#allocation2] sm:$0xff] 0.0
    %181 = vst [vmem:[#allocation2 + $0x8] sm:$0xff] 0.0
    %182 = vst [vmem:[#allocation3] sm:$0xff] 0.0
    %183 = vst [vmem:[#allocation3 + $0x8] sm:$0xff] 0.0
  $region21: #{combination_loss.1} parent=0 // pred_fallthru
    _
  %s184 = smul.u32 %s175, 16
  %v185 = vlaneseq
  %v186 = vshrl.u32 %v185, 7
  %v187 = vadd.s32 %v186, 8
  %v188 = vstv %s184
  %v189 = vadd.s32 %v188, %v186
  %v190 = vadd.s32 %v188, %v187
  %vm191 = vcmp.lt.s32.totalorder %v189, 1
  %vm192 = vcmp.lt.s32.totalorder %v190, 1
  %v193 = vld [vmem:[%s123] sm:$0xff]
  %v194 = vld [vmem:[%s123 + $0x8] sm:$0xff]
  %v195 = vld [vmem:[%s138] sm:$0xff]
  %v196 = vld [vmem:[%s138 + $0x8] sm:$0xff]
  %v197 = vsub.f32 %v193, %v195
  %v198 = vsub.f32 %v194, %v196
  %v199 = vld [vmem:[%s153] sm:$0xff]
  %v200 = vld [vmem:[%s153 + $0x8] sm:$0xff]
  %v201 = vld [vmem:[%s168] sm:$0xff]
  %v202 = vld [vmem:[%s168 + $0x8] sm:$0xff]
  %v203 = vsub.f32 %v199, %v201
  %v204 = vsub.f32 %v200, %v202
  %v205 = vld [vmem:[#allocation2] sm:$0xff]
  %v206 = vld [vmem:[#allocation2 + $0x8] sm:$0xff]
  %v207 = vmul.f32 %v197, %v197
  %v208 = vmul.f32 %v198, %v198
  %v209 = vsel %vm191, %v207, 0.0
  %v210 = vsel %vm192, %v208, 0.0
  %v211 = vadd.f32 %v205, %v209
  %v212 = vadd.f32 %v206, %v210
  %213 = vst [vmem:[#allocation2] sm:$0xff] %v211
  %214 = vst [vmem:[#allocation2 + $0x8] sm:$0xff] %v212
  %v215 = vld [vmem:[#allocation3] sm:$0xff]
  %v216 = vld [vmem:[#allocation3 + $0x8] sm:$0xff]
  %v217 = vmul.f32 %v203, %v203
  %v218 = vmul.f32 %v204, %v204
  %v219 = vsel %vm191, %v217, 0.0
  %v220 = vsel %vm192, %v218, 0.0
  %v221 = vadd.f32 %v215, %v219
  %v222 = vadd.f32 %v216, %v220
  %223 = vst [vmem:[#allocation3] sm:$0xff] %v221
  %224 = vst [vmem:[#allocation3 + $0x8] sm:$0xff] %v222
  // Predicated region
  $region22: #{combination_loss.1} parent=0 // pred_check
    %p225 = pneg %p176
  $region23: #{combination_loss.1} parent=0 // pred_check_branch
    %227 = sbr.rel (%p225) target = $region25
  $region24: #{combination_loss.1} parent=0 // pred_region
    %v228 = vld [vmem:[#allocation2] sm:$0xff]
    %v229 = vld [vmem:[#allocation2 + $0x8] sm:$0xff]
    %v230 = vadd.f32 %v228, %v229
    %231 = vst [vmem:[%s4] sm:$0xff] %v230
    %v232 = vld [vmem:[#allocation3] sm:$0xff]
    %v233 = vld [vmem:[#allocation3 + $0x8] sm:$0xff]
    %v234 = vadd.f32 %v232, %v233
    %235 = vst [vmem:[%s5] sm:$0xff] %v234
  $region25: #{combination_loss.1} parent=0 // pred_fallthru
    _
  // Predicated region
  $region26: #{combination_loss.1} parent=0 // pred_check
    _
  $region27: #{combination_loss.1} parent=0 // pred_check_branch
    %237 = sbr.rel (0) target = $region29
  $region28: #{combination_loss.1} parent=0 // pred_region
    _
  $region29: #{combination_loss.1} parent=0 // pred_fallthru
    _
  // Predicated region
  $region30: #{combination_loss.1} parent=0 // pred_check
    _
  $region31: #{combination_loss.1} parent=0 // pred_check_branch
    %239 = sbr.rel (0) target = $region33
  $region32: #{combination_loss.1} parent=0 // pred_region
    _
  $region33: #{combination_loss.1} parent=0 // pred_fallthru
    _
  // Predicated region
  $region34: #{combination_loss.1} parent=0 // pred_check
    _
  $region35: #{combination_loss.1} parent=0 // pred_check_branch
    %241 = sbr.rel (0) target = $region37
  $region36: #{combination_loss.1} parent=0 // pred_region
    _
  $region37: #{combination_loss.1} parent=0 // pred_fallthru
    _
  // Predicated region
  $region38: #{combination_loss.1} parent=0 // pred_check
    _
  $region39: #{combination_loss.1} parent=0 // pred_check_branch
    %243 = sbr.rel (0) target = $region41
  $region40: #{combination_loss.1} parent=0 // pred_region
    _
  $region41: #{combination_loss.1} parent=0 // pred_fallthru
    _

</llo_original>
